<compile_context>
chip_gen: v6e
topology: v6e:2x2x1
jax: 0.10.0
libtpu: 0.0.40
codegen_flags: <defaults>
</compile_context>

<pallas_src>
import math

import jax
import jax.numpy as jnp
import numpy as np
from jax.experimental import pallas as pl
from jax.experimental.pallas import tpu as pltpu

EPS = 1e-5
INV_SQRT2 = 1.0 / math.sqrt(2.0)


def _cdiv(a, b):
    return -(-a // b)


def _round_up(a, m):
    return _cdiv(a, m) * m


# ----------------------------------------------------------------------------
# In-kernel building blocks
# ----------------------------------------------------------------------------
def _gn_gelu_lanes(x, red, bc, w, b):
    """GroupNorm (num_groups == num_channels) + exact-erf GELU on a lane-folded tile.

    x:   (C, NT) f32 with NT = Bt*L lanes (Bt samples, L contiguous lanes each).
    red: (NT, Bt) f32 segment-reduce matrix (1/L on each sample's L rows).
    bc:  (Bt, NT) f32 segment-broadcast matrix (1 on each sample's L columns).
    w,b: (C, 1) per-channel affine.

    E[x] and E[x^2] come from ONE MXU reduce matmul over the sublane-stacked
    [x ; x*x] operand, then one thin broadcast matmul; var = E[x^2] - mean^2
    (biased, matching PyTorch GroupNorm).  No cross-sample leakage by
    construction of red/bc.
    """
    C = x.shape[0]                                    # multiple of 8 (padded on host)
    stacked = jnp.concatenate([x, x * x], axis=0)     # (2C, NT), tile-aligned
    stats = jnp.dot(stacked, red, preferred_element_type=jnp.float32)    # (2C, Bt)
    stats_b = jnp.dot(stats, bc, preferred_element_type=jnp.float32)     # (2C, NT)
    mean = stats_b[:C]
    var = jnp.maximum(stats_b[C:] - mean * mean, 0.0)
    xn = (x - mean) * jax.lax.rsqrt(var + EPS) * w + b
    # exact-erf GELU to match torch.nn.GELU() (tanh approx would move this to
    # the EUP slot but changes numerics, so it is not used).
    return 0.5 * xn * (1.0 + jax.lax.erf(xn * INV_SQRT2))


def make_conv1d_block_kernel(k_max, L):
    p_max = (k_max - 1) // 2

    def kernel(x_ref, red_ref, bc_ref, gn1_w_ref, gn1_b_ref, wf_ref, bf_ref,
               gn2_w_ref, gn2_b_ref, wr_ref, br_ref, out_ref):
        x = x_ref[...]                                   # (C_in_p, NT) f32
        red = red_ref[...]                               # (NT, Bt)
        bc = bc_ref[...]                                 # (Bt, NT)
        NT = x.shape[1]
        # lane position of each column inside its own sample (0..L-1)
        pos = jax.lax.broadcasted_iota(jnp.int32, (1, NT), 1) % L

        # ---- block #1: GroupNorm -> GELU -> fused multi-kernel conv (+conv_down) ----
        g = _gn_gelu_lanes(x, red, bc, gn1_w_ref[...], gn1_b_ref[...])

        # Per-tap shifted inputs stacked along sublanes: (k_max*C_in_p, NT).
        # C_in_p % 8 == 0, so every tap block is (8,128)-tile aligned and the
        # concat lowers to plain copies (no relayout).  Shifts are lane
        # rotations (XLU slot); masks reproduce the per-sample Conv1d zero
        # padding so adjacent samples on the lane axis never bleed.
        pieces = []
        for t in range(k_max):
            d = t - p_max                                # tap offset, -p_max..p_max
            if d == 0:
                pieces.append(g)
            else:
                shifted = pltpu.roll(g, shift=(-d) % NT, axis=1)  # shifted[:, i] = g[:, i+d]
                valid = jnp.logical_and(pos + d >= 0, pos + d < L)
                pieces.append(jnp.where(valid, shifted, 0.0))
        gstack = jnp.concatenate(pieces, axis=0) if len(pieces) > 1 else pieces[0]

        # Single MXU matmul with K = k_max*C_in_p; conv_down and all biases fused.
        # Weights arrive pre-cast to the MXU operand dtype (bf16 on v6e/v7x).
        y = jnp.dot(wf_ref[...], gstack.astype(wf_ref.dtype),
                    preferred_element_type=jnp.float32) + bf_ref[...]

        # ---- residual block #2 (kernel size 1) + skip add ----
        g2 = _gn_gelu_lanes(y, red, bc, gn2_w_ref[...], gn2_b_ref[...])
        z = jnp.dot(wr_ref[...], g2.astype(wr_ref.dtype),
                    preferred_element_type=jnp.float32) + br_ref[...]
        out_ref[...] = (z + y).astype(out_ref.dtype)

    return kernel


# ----------------------------------------------------------------------------
# Host-side weight preparation
# ----------------------------------------------------------------------------
def _pad2d(a, rows, cols):
    a = np.asarray(a, np.float32)
    out = np.zeros((rows, cols), np.float32)
    out[:a.shape[0], :a.shape[1]] = a
    return jnp.asarray(out)


def _fuse_conv_down(params, kernel_sizes, C_in, C_out, C_in_p, C_out_p, k_max):
    """Fold the 1x1 conv_down into the per-tap conv weights (exact fusion: no
    nonlinearity between the k-convs and conv_down), padded to sublane-aligned
    channel counts.

    Returns:
      w_flat  (C_out_p, k_max*C_in_p): columns [t*C_in_p:(t+1)*C_in_p] hold the
              fused weight for tap offset d = t - (k_max-1)//2 (padded rows/cols zero).
      b_fused (C_out_p, 1)
    """
    p_max = (k_max - 1) // 2
    n_k = len(kernel_sizes)
    w_fused = np.zeros((k_max, C_out_p, C_in_p), np.float32)
    b_fused = np.zeros((C_out_p, 1), np.float32)
    if n_k > 1:
        down_w = np.asarray(params["down_w"], np.float32)
        b_fused[:C_out] = np.asarray(params["down_b"], np.float32)
        d_blocks = [down_w[:, i * C_out:(i + 1) * C_out] for i in range(n_k)]
    else:
        d_blocks = [np.eye(C_out, dtype=np.float32)]
    for i, k in enumerate(kernel_sizes):
        p = (k - 1) // 2
        w_i = np.asarray(params["conv_ws"][i], np.float32)   # (k, C_out, C_in)
        b_i = np.asarray(params["conv_bs"][i], np.float32)   # (C_out, 1)
        for j in range(k):
            w_fused[(j - p) + p_max, :C_out, :C_in] += d_blocks[i] @ w_i[j]
        b_fused[:C_out] += d_blocks[i] @ b_i
    w_flat = np.transpose(w_fused, (1, 0, 2)).reshape(C_out_p, k_max * C_in_p)
    return jnp.asarray(w_flat), jnp.asarray(b_fused)


# ----------------------------------------------------------------------------
# Tiling
# ----------------------------------------------------------------------------
def _num_tensorcores():
    """Best-effort TensorCore count: v4/v5p/v7x expose 2 TCs, v5e/v6e expose 1."""
    try:
        kind = jax.devices()[0].device_kind.lower()
    except Exception:
        return 1
    return 2 if any(t in kind for t in ("v4", "v5p", "v7", "7x")) else 1


def _pick_tiling(B, L, min_steps=1, max_lanes=4096, stat_bytes_budget=8 << 20):
    """Pick (samples-per-step Bt, grid steps) so that:
      * every tile's lane width Bt*L is a multiple of 128 (unmasked, lane-dense vst),
      * the thin reduce/broadcast matrices stay within a small VMEM budget,
      * >= min_steps 'parallel' grid steps exist (2 on multi-TC chips, else 1),
      * tiles are as wide as possible (amortize the ~0.35us per-step overhead).
    The wrapper zero-pads the batch up to Bt * n_steps.
    """
    unit = 128 // math.gcd(L, 128)                       # min Bt giving 128-multiple lanes
    bt = max(unit, (max_lanes // (unit * L)) * unit)     # lane-width cap
    bt = min(bt, unit * _cdiv(B, unit))                  # no wider than the (padded) batch
    # keep the (NT x Bt) reduce + (Bt x NT) broadcast matrices (double-buffered) small
    while bt > unit and 16 * bt * bt * L > stat_bytes_budget:
        bt -= unit
    n_steps = max(min_steps, _cdiv(B, bt))
    bt = max(unit, unit * _cdiv(_cdiv(B, n_steps), unit))   # spread real work across steps
    n_steps = max(min_steps, _cdiv(B, bt))
    return bt, n_steps


# ----------------------------------------------------------------------------
# Forward wrapper
# ----------------------------------------------------------------------------
def conv1d_block_forward(x, params, kernel_sizes, *, mxu_dtype=jnp.float32,
                         max_lanes=4096, min_steps=None):
    B, C_in, L = x.shape
    C_out = params["res_w"].shape[0]
    assert all(k % 2 == 1 for k in kernel_sizes), "odd kernel sizes ('same' padding) only"
    k_max = max(kernel_sizes)

    C_in_p = _round_up(C_in, 8)        # sublane-aligned channel counts
    C_out_p = _round_up(C_out, 8)

    if min_steps is None:
        min_steps = _num_tensorcores()
    Bt, n_steps = _pick_tiling(B, L, min_steps=min_steps, max_lanes=max_lanes)
    NT = Bt * L
    B_pad = Bt * n_steps

    # ---- host-side weight prep (once per model in practice, not per call) ----
    w_flat, b_fused = _fuse_conv_down(params, kernel_sizes, C_in, C_out,
                                      C_in_p, C_out_p, k_max)
    gn1_w = _pad2d(params["gn1_w"], C_in_p, 1)
    gn1_b = _pad2d(params["gn1_b"], C_in_p, 1)
    gn2_w = _pad2d(params["gn2_w"], C_out_p, 1)
    gn2_b = _pad2d(params["gn2_b"], C_out_p, 1)
    wr = _pad2d(params["res_w"], C_out_p, C_out_p)
    br = _pad2d(params["res_b"], C_out_p, 1)

    # MXU operand dtype for the two weight matmuls (bf16 recommended on v6e/v7x,
    # f32 accumulation kept).  GroupNorm reduce/broadcast matmuls and all vector
    # math stay f32 for accuracy.
    wf_in = w_flat.astype(mxu_dtype)
    wr_in = wr.astype(mxu_dtype)

    # Thin per-sample reduce / broadcast matrices (replace the old dense (NT,NT) segmean).
    seg = np.arange(NT) // L
    red = jnp.asarray((seg[:, None] == np.arange(Bt)[None, :]).astype(np.float32) / float(L))
    bc = jnp.asarray((np.arange(Bt)[:, None] == seg[None, :]).astype(np.float32))

    # NCL -> (C_pad, B_pad*L): channels (zero-padded to 8) on sublanes,
    # batch*length lane-dense; batch zero-padded so every grid step's lane
    # width is an unmasked multiple of 128.
    xp = jnp.pad(x.astype(jnp.float32), ((0, B_pad - B), (0, C_in_p - C_in), (0, 0)))
    x2 = jnp.transpose(xp, (1, 0, 2)).reshape(C_in_p, B_pad * L)

    inputs = [x2, red, bc, gn1_w, gn1_b, wf_in, b_fused, gn2_w, gn2_b, wr_in, br]

    in_specs = [pl.BlockSpec((C_in_p, NT), lambda i: (0, i))]
    # Parameter blocks are full-shape with a constant index map -> VMEM-resident.
    # After removing the NT^2 segmean they are KB-scale, so default
    # double-buffering is harmless and pipeline_mode=pl.Buffered(1) is omitted.
    in_specs += [pl.BlockSpec(a.shape, lambda i: (0, 0)) for a in inputs[1:]]

    kernel = make_conv1d_block_kernel(k_max, L)
    out2 = pl.pallas_call(
        kernel,
        out_shape=jax.ShapeDtypeStruct((C_out_p, B_pad * L), jnp.float32),
        grid=(n_steps,),
        in_specs=in_specs,
        out_specs=pl.BlockSpec((C_out_p, NT), lambda i: (0, i)),
        compiler_params=pltpu.CompilerParams(
            dimension_semantics=("parallel",),
            vmem_limit_bytes=32 * 1024 * 1024),
    )(*inputs)

    out = out2.reshape(C_out_p, B_pad, L)[:C_out, :B]
    return jnp.transpose(out, (1, 0, 2))


# ----------------------------------------------------------------------------
# Synthetic params + pure-JAX reference
# ----------------------------------------------------------------------------
def init_params(key, in_ch, out_ch, kernel_sizes):
    """Deterministic synthetic init matching the PyTorch _init_weights rules."""
    n_k = len(kernel_sizes)
    keys = jax.random.split(key, n_k + 2)
    conv_ws, conv_bs = [], []
    for i, k in enumerate(kernel_sizes):
        std = math.sqrt(2.0 / (k * out_ch))                    # fan_out = k * out_ch
        conv_ws.append(std * jax.random.normal(keys[i], (k, out_ch, in_ch), jnp.float32))
        conv_bs.append(jnp.zeros((out_ch, 1), jnp.float32))
    down_std = math.sqrt(2.0 / out_ch)                         # 1x1 conv: fan_out = out_ch
    down_w = down_std * jax.random.normal(keys[n_k], (out_ch, n_k * out_ch), jnp.float32)
    down_b = jnp.zeros((out_ch, 1), jnp.float32)
    res_w = down_std * jax.random.normal(keys[n_k + 1], (out_ch, out_ch), jnp.float32)
    res_b = jnp.zeros((out_ch, 1), jnp.float32)
    return dict(
        gn1_w=jnp.ones((in_ch, 1), jnp.float32),
        gn1_b=jnp.zeros((in_ch, 1), jnp.float32),
        conv_ws=conv_ws, conv_bs=conv_bs,
        down_w=down_w, down_b=down_b,
        gn2_w=jnp.ones((out_ch, 1), jnp.float32),
        gn2_b=jnp.zeros((out_ch, 1), jnp.float32),
        res_w=res_w, res_b=res_b,
    )


def reference_forward(x, params, kernel_sizes):
    """Pure-JAX reference with the original (unfused) math for a correctness check."""
    HI = jax.lax.Precision.HIGHEST

    def gn_gelu(t, w, b):
        mean = t.mean(-1, keepdims=True)
        var = ((t - mean) ** 2).mean(-1, keepdims=True)
        tn = (t - mean) / jnp.sqrt(var + EPS) * w + b
        return 0.5 * tn * (1.0 + jax.lax.erf(tn * INV_SQRT2))

    B, C_in, L = x.shape
    g = gn_gelu(x, params["gn1_w"], params["gn1_b"])
    outs = []
    for i, k in enumerate(kernel_sizes):
        p = (k - 1) // 2
        gp = jnp.pad(g, ((0, 0), (0, 0), (p, p)))
        w = params["conv_ws"][i]
        acc = jnp.zeros((B, w.shape[1], L), jnp.float32) + params["conv_bs"][i]
        for j in range(k):
            acc = acc + jnp.einsum("oc,bcl->bol", w[j], gp[:, :, j:j + L], precision=HI)
        outs.append(acc)
    if len(kernel_sizes) > 1:
        cat = jnp.concatenate(outs, axis=1)
        y = jnp.einsum("oc,bcl->bol", params["down_w"], cat, precision=HI) + params["down_b"]
    else:
        y = outs[0]
    add_ = y
    g2 = gn_gelu(y, params["gn2_w"], params["gn2_b"])
    z = jnp.einsum("oc,bcl->bol", params["res_w"], g2, precision=HI) + params["res_b"]
    return z + add_


if __name__ == "__main__":
    # TODO(synk): sample_type='maxpool'/'upsample' branches (MaxPool1d / nearest
    # Upsample) are not exercised here; sample_type=None is implemented.
    B, C_in, C_out, L = 16, 4, 8, 16
    kernel_sizes = (3, 5)

    key = jax.random.PRNGKey(0)
    k_x, k_p = jax.random.split(key)
    x = jax.random.normal(k_x, (B, C_in, L), jnp.float32)
    params = init_params(k_p, C_in, C_out, kernel_sizes)

    ref = jax.block_until_ready(reference_forward(x, params, kernel_sizes))

    # f32 MXU operands (default; the right choice on v5e): fidelity check.
    # Tolerance slightly relaxed vs. the unfused reference because the fused
    # conv_down, segmented GN-stat matmuls and one-pass variance change f32
    # summation order.
    out_f32 = jax.block_until_ready(
        conv1d_block_forward(x, params, kernel_sizes, mxu_dtype=jnp.float32))
    assert out_f32.shape == (B, C_out, L)
    np.testing.assert_allclose(np.asarray(out_f32), np.asarray(ref), rtol=1e-2, atol=1e-2)

    # bf16 MXU operands (recommended default on v6e/v7x: ~3x fewer MXU passes,
    # f32 accumulation kept; GN stats stay f32).  Loose sanity bound only — the
    # f32 run above is the fidelity check.
    out_bf16 = jax.block_until_ready(
        conv1d_block_forward(x, params, kernel_sizes, mxu_dtype=jnp.bfloat16))
    assert out_bf16.shape == (B, C_out, L)
    np.testing.assert_allclose(np.asarray(out_bf16), np.asarray(ref), rtol=1e-1, atol=1e-1)

    print("KERNEL_OK")
</pallas_src>

<mosaic_0001>
module attributes {stable_mosaic.version = 11 : i64} {
  func.func @kernel(%arg0: i32, %arg1: memref<8x256xf32, #tpu.memory_space<vmem>>, %arg2: memref<256x16xf32, #tpu.memory_space<vmem>>, %arg3: memref<16x256xf32, #tpu.memory_space<vmem>>, %arg4: memref<8x1xf32, #tpu.memory_space<vmem>>, %arg5: memref<8x1xf32, #tpu.memory_space<vmem>>, %arg6: memref<8x40xf32, #tpu.memory_space<vmem>>, %arg7: memref<8x1xf32, #tpu.memory_space<vmem>>, %arg8: memref<8x1xf32, #tpu.memory_space<vmem>>, %arg9: memref<8x1xf32, #tpu.memory_space<vmem>>, %arg10: memref<8x8xf32, #tpu.memory_space<vmem>>, %arg11: memref<8x1xf32, #tpu.memory_space<vmem>>, %arg12: memref<8x256xf32, #tpu.memory_space<vmem>>) attributes {dimension_semantics = [#tpu.dimension_semantics<parallel>], iteration_bounds = array<i64: 1>, scalar_prefetch = 0 : i64, scratch_operands = 0 : i64, tpu.core_type = #tpu.core_type<tc>, window_params = [{transform_indices = @transform_0, window_bounds = array<i64: 8, 256>}, {pipeline_mode = #tpu.pipeline_mode<synchronous>, transform_indices = @transform_1, window_bounds = array<i64: 256, 16>}, {pipeline_mode = #tpu.pipeline_mode<synchronous>, transform_indices = @transform_2, window_bounds = array<i64: 16, 256>}, {pipeline_mode = #tpu.pipeline_mode<synchronous>, transform_indices = @transform_3, window_bounds = array<i64: 8, 1>}, {pipeline_mode = #tpu.pipeline_mode<synchronous>, transform_indices = @transform_4, window_bounds = array<i64: 8, 1>}, {pipeline_mode = #tpu.pipeline_mode<synchronous>, transform_indices = @transform_5, window_bounds = array<i64: 8, 40>}, {pipeline_mode = #tpu.pipeline_mode<synchronous>, transform_indices = @transform_6, window_bounds = array<i64: 8, 1>}, {pipeline_mode = #tpu.pipeline_mode<synchronous>, transform_indices = @transform_7, window_bounds = array<i64: 8, 1>}, {pipeline_mode = #tpu.pipeline_mode<synchronous>, transform_indices = @transform_8, window_bounds = array<i64: 8, 1>}, {pipeline_mode = #tpu.pipeline_mode<synchronous>, transform_indices = @transform_9, window_bounds = array<i64: 8, 8>}, {pipeline_mode = #tpu.pipeline_mode<synchronous>, transform_indices = @transform_10, window_bounds = array<i64: 8, 1>}, {transform_indices = @transform_11, window_bounds = array<i64: 8, 256>}]} {
    %c0 = arith.constant 0 : index
    %c0_0 = arith.constant 0 : index
    %0 = vector.load %arg1[%c0, %c0_0] : memref<8x256xf32, #tpu.memory_space<vmem>>, vector<8x256xf32>
    %c0_1 = arith.constant 0 : index
    %c0_2 = arith.constant 0 : index
    %1 = vector.load %arg2[%c0_1, %c0_2] : memref<256x16xf32, #tpu.memory_space<vmem>>, vector<256x16xf32>
    %c0_3 = arith.constant 0 : index
    %c0_4 = arith.constant 0 : index
    %2 = vector.load %arg3[%c0_3, %c0_4] : memref<16x256xf32, #tpu.memory_space<vmem>>, vector<16x256xf32>
    %3 = tpu.iota {dimensions = array<i32: 1>} : vector<1x256xi32>
    %c16_i32 = arith.constant 16 : i32
    %c0_i32 = arith.constant 0 : i32
    %4 = arith.cmpi eq, %c16_i32, %c0_i32 : i32
    %c1_i32 = arith.constant 1 : i32
    %5 = arith.select %4, %c1_i32, %c16_i32 : i32
    %6 = vector.broadcast %5 : i32 to vector<1x256xi32>
    %7 = arith.remsi %3, %6 : vector<1x256xi32>
    %c0_i32_5 = arith.constant 0 : i32
    %8 = vector.broadcast %c0_i32_5 : i32 to vector<1x256xi32>
    %9 = arith.cmpi ne, %7, %8 : vector<1x256xi32>
    %c0_i32_6 = arith.constant 0 : i32
    %10 = vector.broadcast %c0_i32_6 : i32 to vector<1x256xi32>
    %11 = arith.cmpi slt, %7, %10 : vector<1x256xi32>
    %c0_i32_7 = arith.constant 0 : i32
    %12 = arith.cmpi slt, %5, %c0_i32_7 : i32
    %13 = vector.broadcast %12 : i1 to vector<1x256xi1>
    %14 = vector.broadcast %13 : vector<1x256xi1> to vector<1x256xi1>
    %15 = arith.xori %11, %14 : vector<1x256xi1>
    %16 = arith.andi %15, %9 : vector<1x256xi1>
    %17 = vector.broadcast %5 : i32 to vector<1x256xi32>
    %18 = arith.addi %7, %17 : vector<1x256xi32>
    %19 = arith.select %16, %18, %7 : vector<1x256xi1>, vector<1x256xi32>
    %c0_8 = arith.constant 0 : index
    %c0_9 = arith.constant 0 : index
    %20 = vector.load %arg4[%c0_8, %c0_9] : memref<8x1xf32, #tpu.memory_space<vmem>>, vector<8x1xf32>
    %c0_10 = arith.constant 0 : index
    %c0_11 = arith.constant 0 : index
    %21 = vector.load %arg5[%c0_10, %c0_11] : memref<8x1xf32, #tpu.memory_space<vmem>>, vector<8x1xf32>
    %22 = arith.mulf %0, %0 : vector<8x256xf32>
    %23 = tpu.concatenate %0, %22 in 0 : vector<8x256xf32>, vector<8x256xf32> -> vector<16x256xf32>
    %cst = arith.constant dense<0.000000e+00> : vector<16x16xf32>
    %24 = tpu.matmul %23, %1, %cst {dimension_numbers = #tpu.dot_dimension_numbers<[1], [0], [0], [1], [0, 0, 1, 1], [], []>} : vector<16x256xf32>, vector<256x16xf32>, vector<16x16xf32> -> vector<16x16xf32>
    %cst_12 = arith.constant dense<0.000000e+00> : vector<16x256xf32>
    %25 = tpu.matmul %24, %2, %cst_12 {dimension_numbers = #tpu.dot_dimension_numbers<[1], [0], [0], [1], [0, 0, 1, 1], [], []>} : vector<16x16xf32>, vector<16x256xf32>, vector<16x256xf32> -> vector<16x256xf32>
    %26 = vector.extract_strided_slice %25 {offsets = [0, 0], sizes = [8, 256], strides = [1, 1]} : vector<16x256xf32> to vector<8x256xf32>
    %27 = vector.extract_strided_slice %25 {offsets = [8, 0], sizes = [8, 256], strides = [1, 1]} : vector<16x256xf32> to vector<8x256xf32>
    %28 = arith.mulf %26, %26 : vector<8x256xf32>
    %29 = arith.subf %27, %28 : vector<8x256xf32>
    %cst_13 = arith.constant 0.000000e+00 : f32
    %30 = vector.broadcast %cst_13 : f32 to vector<8x256xf32>
    %31 = arith.maximumf %29, %30 : vector<8x256xf32>
    %32 = arith.subf %0, %26 : vector<8x256xf32>
    %cst_14 = arith.constant 9.99999974E-6 : f32
    %33 = vector.broadcast %cst_14 : f32 to vector<8x256xf32>
    %34 = arith.addf %31, %33 : vector<8x256xf32>
    %35 = math.rsqrt %34 : vector<8x256xf32>
    %36 = arith.mulf %32, %35 : vector<8x256xf32>
    %37 = vector.broadcast %20 : vector<8x1xf32> to vector<8x256xf32>
    %38 = arith.mulf %36, %37 : vector<8x256xf32>
    %39 = vector.broadcast %21 : vector<8x1xf32> to vector<8x256xf32>
    %40 = arith.addf %38, %39 : vector<8x256xf32>
    %cst_15 = arith.constant 5.000000e-01 : f32
    %41 = vector.broadcast %cst_15 : f32 to vector<8x256xf32>
    %42 = arith.mulf %41, %40 : vector<8x256xf32>
    %cst_16 = arith.constant 0.707106769 : f32
    %43 = vector.broadcast %cst_16 : f32 to vector<8x256xf32>
    %44 = arith.mulf %40, %43 : vector<8x256xf32>
    %45 = math.erf %44 : vector<8x256xf32>
    %cst_17 = arith.constant 1.000000e+00 : f32
    %46 = vector.broadcast %cst_17 : f32 to vector<8x256xf32>
    %47 = arith.addf %46, %45 : vector<8x256xf32>
    %48 = arith.mulf %42, %47 : vector<8x256xf32>
    %c2_i32 = arith.constant 2 : i32
    %49 = tpu.dynamic_rotate %48 by %c2_i32 dim 1 : vector<8x256xf32>, i32 -> vector<8x256xf32>
    %c-2_i32 = arith.constant -2 : i32
    %50 = vector.broadcast %c-2_i32 : i32 to vector<1x256xi32>
    %51 = arith.addi %19, %50 : vector<1x256xi32>
    %c0_i32_18 = arith.constant 0 : i32
    %52 = vector.broadcast %c0_i32_18 : i32 to vector<1x256xi32>
    %53 = arith.cmpi sge, %51, %52 : vector<1x256xi32>
    %c-2_i32_19 = arith.constant -2 : i32
    %54 = vector.broadcast %c-2_i32_19 : i32 to vector<1x256xi32>
    %55 = arith.addi %19, %54 : vector<1x256xi32>
    %c16_i32_20 = arith.constant 16 : i32
    %56 = vector.broadcast %c16_i32_20 : i32 to vector<1x256xi32>
    %57 = arith.cmpi slt, %55, %56 : vector<1x256xi32>
    %58 = arith.andi %53, %57 : vector<1x256xi1>
    %cst_21 = arith.constant 0.000000e+00 : f32
    %59 = vector.shape_cast %58 : vector<1x256xi1> to vector<1x256xi1>
    %60 = vector.broadcast %59 : vector<1x256xi1> to vector<8x256xi1>
    %61 = vector.broadcast %cst_21 : f32 to vector<8x256xf32>
    %62 = arith.select %60, %49, %61 : vector<8x256xi1>, vector<8x256xf32>
    %c1_i32_22 = arith.constant 1 : i32
    %63 = tpu.dynamic_rotate %48 by %c1_i32_22 dim 1 : vector<8x256xf32>, i32 -> vector<8x256xf32>
    %c-1_i32 = arith.constant -1 : i32
    %64 = vector.broadcast %c-1_i32 : i32 to vector<1x256xi32>
    %65 = arith.addi %19, %64 : vector<1x256xi32>
    %c0_i32_23 = arith.constant 0 : i32
    %66 = vector.broadcast %c0_i32_23 : i32 to vector<1x256xi32>
    %67 = arith.cmpi sge, %65, %66 : vector<1x256xi32>
    %c-1_i32_24 = arith.constant -1 : i32
    %68 = vector.broadcast %c-1_i32_24 : i32 to vector<1x256xi32>
    %69 = arith.addi %19, %68 : vector<1x256xi32>
    %c16_i32_25 = arith.constant 16 : i32
    %70 = vector.broadcast %c16_i32_25 : i32 to vector<1x256xi32>
    %71 = arith.cmpi slt, %69, %70 : vector<1x256xi32>
    %72 = arith.andi %67, %71 : vector<1x256xi1>
    %cst_26 = arith.constant 0.000000e+00 : f32
    %73 = vector.shape_cast %72 : vector<1x256xi1> to vector<1x256xi1>
    %74 = vector.broadcast %73 : vector<1x256xi1> to vector<8x256xi1>
    %75 = vector.broadcast %cst_26 : f32 to vector<8x256xf32>
    %76 = arith.select %74, %63, %75 : vector<8x256xi1>, vector<8x256xf32>
    %c255_i32 = arith.constant 255 : i32
    %77 = tpu.dynamic_rotate %48 by %c255_i32 dim 1 : vector<8x256xf32>, i32 -> vector<8x256xf32>
    %c1_i32_27 = arith.constant 1 : i32
    %78 = vector.broadcast %c1_i32_27 : i32 to vector<1x256xi32>
    %79 = arith.addi %19, %78 : vector<1x256xi32>
    %c0_i32_28 = arith.constant 0 : i32
    %80 = vector.broadcast %c0_i32_28 : i32 to vector<1x256xi32>
    %81 = arith.cmpi sge, %79, %80 : vector<1x256xi32>
    %c1_i32_29 = arith.constant 1 : i32
    %82 = vector.broadcast %c1_i32_29 : i32 to vector<1x256xi32>
    %83 = arith.addi %19, %82 : vector<1x256xi32>
    %c16_i32_30 = arith.constant 16 : i32
    %84 = vector.broadcast %c16_i32_30 : i32 to vector<1x256xi32>
    %85 = arith.cmpi slt, %83, %84 : vector<1x256xi32>
    %86 = arith.andi %81, %85 : vector<1x256xi1>
    %cst_31 = arith.constant 0.000000e+00 : f32
    %87 = vector.shape_cast %86 : vector<1x256xi1> to vector<1x256xi1>
    %88 = vector.broadcast %87 : vector<1x256xi1> to vector<8x256xi1>
    %89 = vector.broadcast %cst_31 : f32 to vector<8x256xf32>
    %90 = arith.select %88, %77, %89 : vector<8x256xi1>, vector<8x256xf32>
    %c254_i32 = arith.constant 254 : i32
    %91 = tpu.dynamic_rotate %48 by %c254_i32 dim 1 : vector<8x256xf32>, i32 -> vector<8x256xf32>
    %c2_i32_32 = arith.constant 2 : i32
    %92 = vector.broadcast %c2_i32_32 : i32 to vector<1x256xi32>
    %93 = arith.addi %19, %92 : vector<1x256xi32>
    %c0_i32_33 = arith.constant 0 : i32
    %94 = vector.broadcast %c0_i32_33 : i32 to vector<1x256xi32>
    %95 = arith.cmpi sge, %93, %94 : vector<1x256xi32>
    %c2_i32_34 = arith.constant 2 : i32
    %96 = vector.broadcast %c2_i32_34 : i32 to vector<1x256xi32>
    %97 = arith.addi %19, %96 : vector<1x256xi32>
    %c16_i32_35 = arith.constant 16 : i32
    %98 = vector.broadcast %c16_i32_35 : i32 to vector<1x256xi32>
    %99 = arith.cmpi slt, %97, %98 : vector<1x256xi32>
    %100 = arith.andi %95, %99 : vector<1x256xi1>
    %cst_36 = arith.constant 0.000000e+00 : f32
    %101 = vector.shape_cast %100 : vector<1x256xi1> to vector<1x256xi1>
    %102 = vector.broadcast %101 : vector<1x256xi1> to vector<8x256xi1>
    %103 = vector.broadcast %cst_36 : f32 to vector<8x256xf32>
    %104 = arith.select %102, %91, %103 : vector<8x256xi1>, vector<8x256xf32>
    %105 = tpu.concatenate %62, %76, %48, %90, %104 in 0 : vector<8x256xf32>, vector<8x256xf32>, vector<8x256xf32>, vector<8x256xf32>, vector<8x256xf32> -> vector<40x256xf32>
    %c0_37 = arith.constant 0 : index
    %c0_38 = arith.constant 0 : index
    %106 = vector.load %arg6[%c0_37, %c0_38] : memref<8x40xf32, #tpu.memory_space<vmem>>, vector<8x40xf32>
    %cst_39 = arith.constant dense<0.000000e+00> : vector<8x256xf32>
    %107 = tpu.matmul %106, %105, %cst_39 {dimension_numbers = #tpu.dot_dimension_numbers<[1], [0], [0], [1], [0, 0, 1, 1], [], []>} : vector<8x40xf32>, vector<40x256xf32>, vector<8x256xf32> -> vector<8x256xf32>
    %c0_40 = arith.constant 0 : index
    %c0_41 = arith.constant 0 : index
    %108 = vector.load %arg7[%c0_40, %c0_41] : memref<8x1xf32, #tpu.memory_space<vmem>>, vector<8x1xf32>
    %109 = vector.broadcast %108 : vector<8x1xf32> to vector<8x256xf32>
    %110 = arith.addf %107, %109 : vector<8x256xf32>
    %c0_42 = arith.constant 0 : index
    %c0_43 = arith.constant 0 : index
    %111 = vector.load %arg8[%c0_42, %c0_43] : memref<8x1xf32, #tpu.memory_space<vmem>>, vector<8x1xf32>
    %c0_44 = arith.constant 0 : index
    %c0_45 = arith.constant 0 : index
    %112 = vector.load %arg9[%c0_44, %c0_45] : memref<8x1xf32, #tpu.memory_space<vmem>>, vector<8x1xf32>
    %113 = arith.mulf %110, %110 : vector<8x256xf32>
    %114 = tpu.concatenate %110, %113 in 0 : vector<8x256xf32>, vector<8x256xf32> -> vector<16x256xf32>
    %cst_46 = arith.constant dense<0.000000e+00> : vector<16x16xf32>
    %115 = tpu.matmul %114, %1, %cst_46 {dimension_numbers = #tpu.dot_dimension_numbers<[1], [0], [0], [1], [0, 0, 1, 1], [], []>} : vector<16x256xf32>, vector<256x16xf32>, vector<16x16xf32> -> vector<16x16xf32>
    %cst_47 = arith.constant dense<0.000000e+00> : vector<16x256xf32>
    %116 = tpu.matmul %115, %2, %cst_47 {dimension_numbers = #tpu.dot_dimension_numbers<[1], [0], [0], [1], [0, 0, 1, 1], [], []>} : vector<16x16xf32>, vector<16x256xf32>, vector<16x256xf32> -> vector<16x256xf32>
    %117 = vector.extract_strided_slice %116 {offsets = [0, 0], sizes = [8, 256], strides = [1, 1]} : vector<16x256xf32> to vector<8x256xf32>
    %118 = vector.extract_strided_slice %116 {offsets = [8, 0], sizes = [8, 256], strides = [1, 1]} : vector<16x256xf32> to vector<8x256xf32>
    %119 = arith.mulf %117, %117 : vector<8x256xf32>
    %120 = arith.subf %118, %119 : vector<8x256xf32>
    %cst_48 = arith.constant 0.000000e+00 : f32
    %121 = vector.broadcast %cst_48 : f32 to vector<8x256xf32>
    %122 = arith.maximumf %120, %121 : vector<8x256xf32>
    %123 = arith.subf %110, %117 : vector<8x256xf32>
    %cst_49 = arith.constant 9.99999974E-6 : f32
    %124 = vector.broadcast %cst_49 : f32 to vector<8x256xf32>
    %125 = arith.addf %122, %124 : vector<8x256xf32>
    %126 = math.rsqrt %125 : vector<8x256xf32>
    %127 = arith.mulf %123, %126 : vector<8x256xf32>
    %128 = vector.broadcast %111 : vector<8x1xf32> to vector<8x256xf32>
    %129 = arith.mulf %127, %128 : vector<8x256xf32>
    %130 = vector.broadcast %112 : vector<8x1xf32> to vector<8x256xf32>
    %131 = arith.addf %129, %130 : vector<8x256xf32>
    %cst_50 = arith.constant 5.000000e-01 : f32
    %132 = vector.broadcast %cst_50 : f32 to vector<8x256xf32>
    %133 = arith.mulf %132, %131 : vector<8x256xf32>
    %cst_51 = arith.constant 0.707106769 : f32
    %134 = vector.broadcast %cst_51 : f32 to vector<8x256xf32>
    %135 = arith.mulf %131, %134 : vector<8x256xf32>
    %136 = math.erf %135 : vector<8x256xf32>
    %cst_52 = arith.constant 1.000000e+00 : f32
    %137 = vector.broadcast %cst_52 : f32 to vector<8x256xf32>
    %138 = arith.addf %137, %136 : vector<8x256xf32>
    %139 = arith.mulf %133, %138 : vector<8x256xf32>
    %c0_53 = arith.constant 0 : index
    %c0_54 = arith.constant 0 : index
    %140 = vector.load %arg10[%c0_53, %c0_54] : memref<8x8xf32, #tpu.memory_space<vmem>>, vector<8x8xf32>
    %cst_55 = arith.constant dense<0.000000e+00> : vector<8x256xf32>
    %141 = tpu.matmul %140, %139, %cst_55 {dimension_numbers = #tpu.dot_dimension_numbers<[1], [0], [0], [1], [0, 0, 1, 1], [], []>} : vector<8x8xf32>, vector<8x256xf32>, vector<8x256xf32> -> vector<8x256xf32>
    %c0_56 = arith.constant 0 : index
    %c0_57 = arith.constant 0 : index
    %142 = vector.load %arg11[%c0_56, %c0_57] : memref<8x1xf32, #tpu.memory_space<vmem>>, vector<8x1xf32>
    %143 = vector.broadcast %142 : vector<8x1xf32> to vector<8x256xf32>
    %144 = arith.addf %141, %143 : vector<8x256xf32>
    %145 = arith.addf %144, %110 : vector<8x256xf32>
    %c0_58 = arith.constant 0 : index
    %c0_59 = arith.constant 0 : index
    %146 = vector.load %arg12[%c0_58, %c0_59] : memref<8x256xf32, #tpu.memory_space<vmem>>, vector<8x256xf32>
    tpu.vector_store %arg12[%c0_58, %c0_59], %145 {strides = array<i32>} : memref<8x256xf32, #tpu.memory_space<vmem>>, vector<8x256xf32>,
    return
  }
  func.func @transform_0(%arg0: i32) -> (i32, i32) {
    %c0_i32 = arith.constant 0 : i32
    %c0_i32_0 = arith.constant 0 : i32
    return %c0_i32, %arg0 : i32, i32
  }
  func.func @transform_1(%arg0: i32) -> (i32, i32) {
    %c0_i32 = arith.constant 0 : i32
    %c0_i32_0 = arith.constant 0 : i32
    %c0_i32_1 = arith.constant 0 : i32
    return %c0_i32, %c0_i32_0 : i32, i32
  }
  func.func @transform_2(%arg0: i32) -> (i32, i32) {
    %c0_i32 = arith.constant 0 : i32
    %c0_i32_0 = arith.constant 0 : i32
    %c0_i32_1 = arith.constant 0 : i32
    return %c0_i32, %c0_i32_0 : i32, i32
  }
  func.func @transform_3(%arg0: i32) -> (i32, i32) {
    %c0_i32 = arith.constant 0 : i32
    %c0_i32_0 = arith.constant 0 : i32
    %c0_i32_1 = arith.constant 0 : i32
    return %c0_i32, %c0_i32_0 : i32, i32
  }
  func.func @transform_4(%arg0: i32) -> (i32, i32) {
    %c0_i32 = arith.constant 0 : i32
    %c0_i32_0 = arith.constant 0 : i32
    %c0_i32_1 = arith.constant 0 : i32
    return %c0_i32, %c0_i32_0 : i32, i32
  }
  func.func @transform_5(%arg0: i32) -> (i32, i32) {
    %c0_i32 = arith.constant 0 : i32
    %c0_i32_0 = arith.constant 0 : i32
    %c0_i32_1 = arith.constant 0 : i32
    return %c0_i32, %c0_i32_0 : i32, i32
  }
  func.func @transform_6(%arg0: i32) -> (i32, i32) {
    %c0_i32 = arith.constant 0 : i32
    %c0_i32_0 = arith.constant 0 : i32
    %c0_i32_1 = arith.constant 0 : i32
    return %c0_i32, %c0_i32_0 : i32, i32
  }
  func.func @transform_7(%arg0: i32) -> (i32, i32) {
    %c0_i32 = arith.constant 0 : i32
    %c0_i32_0 = arith.constant 0 : i32
    %c0_i32_1 = arith.constant 0 : i32
    return %c0_i32, %c0_i32_0 : i32, i32
  }
  func.func @transform_8(%arg0: i32) -> (i32, i32) {
    %c0_i32 = arith.constant 0 : i32
    %c0_i32_0 = arith.constant 0 : i32
    %c0_i32_1 = arith.constant 0 : i32
    return %c0_i32, %c0_i32_0 : i32, i32
  }
  func.func @transform_9(%arg0: i32) -> (i32, i32) {
    %c0_i32 = arith.constant 0 : i32
    %c0_i32_0 = arith.constant 0 : i32
    %c0_i32_1 = arith.constant 0 : i32
    return %c0_i32, %c0_i32_0 : i32, i32
  }
  func.func @transform_10(%arg0: i32) -> (i32, i32) {
    %c0_i32 = arith.constant 0 : i32
    %c0_i32_0 = arith.constant 0 : i32
    %c0_i32_1 = arith.constant 0 : i32
    return %c0_i32, %c0_i32_0 : i32, i32
  }
  func.func @transform_11(%arg0: i32) -> (i32, i32) {
    %c0_i32 = arith.constant 0 : i32
    %c0_i32_0 = arith.constant 0 : i32
    return %c0_i32, %arg0 : i32, i32
  }
}

</mosaic_0001>

<llo_original>
// kernel: tpu_custom_call.1
$region0: #{tpu_custom_call.1}
  #allocation0 [shape = 'u32[]', space=smem, size = 0x4, offset = 0x4, fixed_abs, tag = 'smem constant byte address 0x4 - core index']
  #allocation1 [shape = 'u32[144,128]{1,0:T(1,128)}', space=vmem, size = 0x12000, scoped, tag = 'internal scratch']
  %s0 = inlined_call_operand.vmem [shape: f32[8,256], index: 0, kind: input, shape index: {}]
  %s1 = inlined_call_operand.vmem [shape: f32[256,16], index: 1, kind: input, shape index: {}]
  %s2 = inlined_call_operand.vmem [shape: f32[16,256], index: 2, kind: input, shape index: {}]
  %s3 = inlined_call_operand.vmem [shape: f32[8,1], index: 3, kind: input, shape index: {}]
  %s4 = inlined_call_operand.vmem [shape: f32[8,1], index: 4, kind: input, shape index: {}]
  %s5 = inlined_call_operand.vmem [shape: f32[8,40], index: 5, kind: input, shape index: {}]
  %s6 = inlined_call_operand.vmem [shape: f32[8,1], index: 6, kind: input, shape index: {}]
  %s7 = inlined_call_operand.vmem [shape: f32[8,1], index: 7, kind: input, shape index: {}]
  %s8 = inlined_call_operand.vmem [shape: f32[8,1], index: 8, kind: input, shape index: {}]
  %s9 = inlined_call_operand.vmem [shape: f32[8,8], index: 9, kind: input, shape index: {}]
  %s10 = inlined_call_operand.vmem [shape: f32[8,1], index: 10, kind: input, shape index: {}]
  %s11 = inlined_call_operand.hbm [shape: f32[8,256], index: 11, kind: output, shape index: {}]
  %s12 = sld [smem:[#allocation0]]
  $region54: #{tpu_custom_call.1} parent=0
    _
  %s14 = ssub.s32 1, %s12
  %s15 = scalar_select 0, %s14, %s12
  $region1: #{tpu_custom_call.1} parent=0
    #allocation2 [shape = 'u8[8192]{0}', space=vmem, size = 0x2000, scoped, tag = 'output window, operand 0, single buffered']
    #allocation3 [shape = 's32[1]{0}', space=sflag, size = 0x4, scoped, tag = 'scoped memory for tpu_custom_call.1']
    %16 = vsyncpa [#allocation3], 0
    // Predicated region
    $region2: #{tpu_custom_call.1} parent=1 // pred_check
      _
    $region3: #{tpu_custom_call.1} parent=1 // pred_check_branch
      %18 = sbr.rel (0) target = $region5
    $region4: #{tpu_custom_call.1} parent=1 // pred_region
      _
    $region5: #{tpu_custom_call.1} parent=1 // pred_fallthru
      _
    // Predicated region
    $region6: #{tpu_custom_call.1} parent=1 // pred_check
      _
    $region7: #{tpu_custom_call.1} parent=1 // pred_check_branch
      %20 = sbr.rel (0) target = $region9
    $region8: #{tpu_custom_call.1} parent=1 // pred_region
      _
    $region9: #{tpu_custom_call.1} parent=1 // pred_fallthru
      _
    // Predicated region
    $region10: #{tpu_custom_call.1} parent=1 // pred_check
      _
    $region11: #{tpu_custom_call.1} parent=1 // pred_check_branch
      %22 = sbr.rel (0) target = $region13
    $region12: #{tpu_custom_call.1} parent=1 // pred_region
      _
    $region13: #{tpu_custom_call.1} parent=1 // pred_fallthru
      _
    // Predicated region
    $region14: #{tpu_custom_call.1} parent=1 // pred_check
      _
    $region15: #{tpu_custom_call.1} parent=1 // pred_check_branch
      %24 = sbr.rel (0) target = $region17
    $region16: #{tpu_custom_call.1} parent=1 // pred_region
      _
    $region17: #{tpu_custom_call.1} parent=1 // pred_fallthru
      _
    // Predicated region
    $region18: #{tpu_custom_call.1} parent=1 // pred_check
      _
    $region19: #{tpu_custom_call.1} parent=1 // pred_check_branch
      %26 = sbr.rel (0) target = $region21
    $region20: #{tpu_custom_call.1} parent=1 // pred_region
      _
    $region21: #{tpu_custom_call.1} parent=1 // pred_fallthru
      _
    // Predicated region
    $region22: #{tpu_custom_call.1} parent=1 // pred_check
      _
    $region23: #{tpu_custom_call.1} parent=1 // pred_check_branch
      %28 = sbr.rel (0) target = $region25
    $region24: #{tpu_custom_call.1} parent=1 // pred_region
      _
    $region25: #{tpu_custom_call.1} parent=1 // pred_fallthru
      _
    // Predicated region
    $region26: #{tpu_custom_call.1} parent=1 // pred_check
      _
    $region27: #{tpu_custom_call.1} parent=1 // pred_check_branch
      %30 = sbr.rel (0) target = $region29
    $region28: #{tpu_custom_call.1} parent=1 // pred_region
      _
    $region29: #{tpu_custom_call.1} parent=1 // pred_fallthru
      _
    // Predicated region
    $region30: #{tpu_custom_call.1} parent=1 // pred_check
      _
    $region31: #{tpu_custom_call.1} parent=1 // pred_check_branch
      %32 = sbr.rel (0) target = $region33
    $region32: #{tpu_custom_call.1} parent=1 // pred_region
      _
    $region33: #{tpu_custom_call.1} parent=1 // pred_fallthru
      _
    // Predicated region
    $region34: #{tpu_custom_call.1} parent=1 // pred_check
      _
    $region35: #{tpu_custom_call.1} parent=1 // pred_check_branch
      %34 = sbr.rel (0) target = $region37
    $region36: #{tpu_custom_call.1} parent=1 // pred_region
      _
    $region37: #{tpu_custom_call.1} parent=1 // pred_fallthru
      _
    // Predicated region
    $region38: #{tpu_custom_call.1} parent=1 // pred_check
      _
    $region39: #{tpu_custom_call.1} parent=1 // pred_check_branch
      %36 = sbr.rel (0) target = $region41
    $region40: #{tpu_custom_call.1} parent=1 // pred_region
      _
    $region41: #{tpu_custom_call.1} parent=1 // pred_fallthru
      _
    // Predicated region
    $region42: #{tpu_custom_call.1} parent=1 // pred_check
      _
    $region43: #{tpu_custom_call.1} parent=1 // pred_check_branch
      %38 = sbr.rel (0) target = $region45
    $region44: #{tpu_custom_call.1} parent=1 // pred_region
      _
    $region45: #{tpu_custom_call.1} parent=1 // pred_fallthru
      _
    %v39 = vld [vmem:[%s0] sm:$0xff]
    %v40 = vld [vmem:[%s0 + $0x8] sm:$0xff]
    %v41 = vld [vmem:[%s1] sm:$0xff]
    %v42 = vld [vmem:[%s1 + $0x8] sm:$0xff]
    %v43 = vld [vmem:[%s1 + $0x10] sm:$0xff]
    %v44 = vld [vmem:[%s1 + $0x18] sm:$0xff]
    %v45 = vld [vmem:[%s1 + $0x20] sm:$0xff]
    %v46 = vld [vmem:[%s1 + $0x28] sm:$0xff]
    %v47 = vld [vmem:[%s1 + $0x30] sm:$0xff]
    %v48 = vld [vmem:[%s1 + $0x38] sm:$0xff]
    %v49 = vld [vmem:[%s1 + $0x40] sm:$0xff]
    %v50 = vld [vmem:[%s1 + $0x48] sm:$0xff]
    %v51 = vld [vmem:[%s1 + $0x50] sm:$0xff]
    %v52 = vld [vmem:[%s1 + $0x58] sm:$0xff]
    %v53 = vld [vmem:[%s1 + $0x60] sm:$0xff]
    %v54 = vld [vmem:[%s1 + $0x68] sm:$0xff]
    %v55 = vld [vmem:[%s1 + $0x70] sm:$0xff]
    %v56 = vld [vmem:[%s1 + $0x78] sm:$0xff]
    %v57 = vld [vmem:[%s1 + $0x80] sm:$0xff]
    %v58 = vld [vmem:[%s1 + $0x88] sm:$0xff]
    %v59 = vld [vmem:[%s1 + $0x90] sm:$0xff]
    %v60 = vld [vmem:[%s1 + $0x98] sm:$0xff]
    %v61 = vld [vmem:[%s1 + $0xa0] sm:$0xff]
    %v62 = vld [vmem:[%s1 + $0xa8] sm:$0xff]
    %v63 = vld [vmem:[%s1 + $0xb0] sm:$0xff]
    %v64 = vld [vmem:[%s1 + $0xb8] sm:$0xff]
    %v65 = vld [vmem:[%s1 + $0xc0] sm:$0xff]
    %v66 = vld [vmem:[%s1 + $0xc8] sm:$0xff]
    %v67 = vld [vmem:[%s1 + $0xd0] sm:$0xff]
    %v68 = vld [vmem:[%s1 + $0xd8] sm:$0xff]
    %v69 = vld [vmem:[%s1 + $0xe0] sm:$0xff]
    %v70 = vld [vmem:[%s1 + $0xe8] sm:$0xff]
    %v71 = vld [vmem:[%s1 + $0xf0] sm:$0xff]
    %v72 = vld [vmem:[%s1 + $0xf8] sm:$0xff]
    %v73 = vld [vmem:[%s2] sm:$0xff]
    %v74 = vld [vmem:[%s2 + $0x8] sm:$0xff]
    %v75 = vld [vmem:[%s2 + $0x10] sm:$0xff]
    %v76 = vld [vmem:[%s2 + $0x18] sm:$0xff]
    %v77 = vlaneseq
    %v78 = vand.u32 %v77, 127
    %v79 = vadd.s32 %v78, 128
    %vm80 = vcmp.lt.s32.totalorder %v78, 0
    %v81 = vsub.s32 0, %v78
    %v82 = vsel %vm80, %v81, %v78
    %v83 = vshrl.u32 %v82, 4
    %v84 = vand.u32 %v82, 15
    %v85 = vsub.s32 0, %v84
    %v86 = vsel %vm80, %v85, %v84
    %vm87 = vcmp.lt.s32.totalorder %v79, 0
    %v88 = vsub.s32 0, %v79
    %v89 = vsel %vm87, %v88, %v79
    %v90 = vshrl.u32 %v89, 4
    %v91 = vand.u32 %v89, 15
    %v92 = vsub.s32 0, %v91
    %v93 = vsel %vm87, %v92, %v91
    %vm94 = vcmp.ne.s32.totalorder %v86, 0
    %vm95 = vcmp.ne.s32.totalorder %v93, 0
    %vm96 = vcmp.lt.s32.totalorder %v86, 0
    %vm97 = vcmp.lt.s32.totalorder %v93, 0
    %vm98 = vmand %vm96, %vm94
    %vm99 = vmand %vm97, %vm95
    %v100 = vadd.s32 %v86, 16
    %v101 = vadd.s32 %v93, 16
    %v102 = vsel %vm98, %v100, %v86
    %v103 = vsel %vm99, %v101, %v93
    %v104 = vld [vmem:[%s3] sm:$0xff]
    %v105 = vld [vmem:[%s4] sm:$0xff]
    %v106 = vmul.f32 %v39, %v39
    %v107 = vmul.f32 %v40, %v40
    %108 = vmatprep.subr.mxu0 0.0
    %109 = vmatpush1.msra.mxu0 %v56
    %110 = vmatprep.subr.mxu0 0.0
    %111 = vmatpush1.msra.mxu0 %v55
    %112 = vmatprep.subr.mxu0 0.0
    %113 = vmatpush1.msra.mxu0 %v54
    %114 = vmatprep.subr.mxu0 0.0
    %115 = vmatpush1.msra.mxu0 %v53
    %116 = vmatprep.subr.mxu0 0.0
    %117 = vmatpush1.msra.mxu0 %v52
    %118 = vmatprep.subr.mxu0 0.0
    %119 = vmatpush1.msra.mxu0 %v51
    %120 = vmatprep.subr.mxu0 0.0
    %121 = vmatpush1.msra.mxu0 %v50
    %122 = vmatprep.subr.mxu0 0.0
    %123 = vmatpush1.msra.mxu0 %v49
    %124 = vmatprep.subr.mxu0 0.0
    %125 = vmatpush1.msra.mxu0 %v48
    %126 = vmatprep.subr.mxu0 0.0
    %127 = vmatpush1.msra.mxu0 %v47
    %128 = vmatprep.subr.mxu0 0.0
    %129 = vmatpush1.msra.mxu0 %v46
    %130 = vmatprep.subr.mxu0 0.0
    %131 = vmatpush1.msra.mxu0 %v45
    %132 = vmatprep.subr.mxu0 0.0
    %133 = vmatpush1.msra.mxu0 %v44
    %134 = vmatprep.subr.mxu0 0.0
    %135 = vmatpush1.msra.mxu0 %v43
    %136 = vmatprep.subr.mxu0 0.0
    %137 = vmatpush1.msra.mxu0 %v42
    %138 = vmatprep.subr.mxu0 0.0
    %139 = vmatpush1.msra.mxu0 %v41
    %140 = vmatprep.subr.mxu0 0.0
    %141 = vmatpush2.msra.mxu0 %v72
    %142 = vmatprep.subr.mxu0 0.0
    %143 = vmatpush2.msra.mxu0 %v71
    %144 = vmatprep.subr.mxu0 0.0
    %145 = vmatpush2.msra.mxu0 %v70
    %146 = vmatprep.subr.mxu0 0.0
    %147 = vmatpush2.msra.mxu0 %v69
    %148 = vmatprep.subr.mxu0 0.0
    %149 = vmatpush2.msra.mxu0 %v68
    %150 = vmatprep.subr.mxu0 0.0
    %151 = vmatpush2.msra.mxu0 %v67
    %152 = vmatprep.subr.mxu0 0.0
    %153 = vmatpush2.msra.mxu0 %v66
    %154 = vmatprep.subr.mxu0 0.0
    %155 = vmatpush2.msra.mxu0 %v65
    %156 = vmatprep.subr.mxu0 0.0
    %157 = vmatpush2.msra.mxu0 %v64
    %158 = vmatprep.subr.mxu0 0.0
    %159 = vmatpush2.msra.mxu0 %v63
    %160 = vmatprep.subr.mxu0 0.0
    %161 = vmatpush2.msra.mxu0 %v62
    %162 = vmatprep.subr.mxu0 0.0
    %163 = vmatpush2.msra.mxu0 %v61
    %164 = vmatprep.subr.mxu0 0.0
    %165 = vmatpush2.msra.mxu0 %v60
    %166 = vmatprep.subr.mxu0 0.0
    %167 = vmatpush2.msra.mxu0 %v59
    %168 = vmatprep.subr.mxu0 0.0
    %169 = vmatpush2.msra.mxu0 %v58
    %170 = vmatprep.subr.mxu0 0.0
    %171 = vmatpush2.msra.mxu0 %v57
    %172 = vmatprep.mubr.f32.mxu0 %v40
    %173 = vmatmul.mubr.f32.gmra.mxu0 %v39
    %v174 = vpop.f32.mrf.mxu0
    %v175 = vadd.f32 0.0, %v174
    %v176 = vpop.f32.mrf.mxu0
    %177 = vmatprep.mubr.f32.mxu0 %v107
    %178 = vmatmul.mubr.f32.gmra.mxu0 %v106
    %v179 = vpop.f32.mrf.mxu0
    %v180 = vadd.f32 0.0, %v179
    %v181 = vpop.f32.mrf.mxu0
    %182 = vdwg.mxu0
    %vm183 = vcmask 130048
    %v185 = vsel %vm183, %v175, 0
    %v188 = vsel %vm183, %v180, 0
    %190 = vmatprep.subr.mxu0 0.0
    %191 = vmatpush1.msra.mxu0 0.0
    %192 = vmatprep.subr.mxu0 0.0
    %193 = vmatpush1.msra.mxu0 0.0
    %194 = vmatprep.subr.mxu0 0.0
    %195 = vmatpush1.msra.mxu0 0.0
    %196 = vmatprep.subr.mxu0 0.0
    %197 = vmatpush1.msra.mxu0 0.0
    %198 = vmatprep.subr.mxu0 0.0
    %199 = vmatpush1.msra.mxu0 0.0
    %200 = vmatprep.subr.mxu0 0.0
    %201 = vmatpush1.msra.mxu0 0.0
    %202 = vmatprep.subr.mxu0 0.0
    %203 = vmatpush1.msra.mxu0 0.0
    %204 = vmatprep.subr.mxu0 0.0
    %205 = vmatpush1.msra.mxu0 0.0
    %206 = vmatprep.subr.mxu0 0.0
    %207 = vmatpush1.msra.mxu0 0.0
    %208 = vmatprep.subr.mxu0 0.0
    %209 = vmatpush1.msra.mxu0 0.0
    %210 = vmatprep.subr.mxu0 0.0
    %211 = vmatpush1.msra.mxu0 0.0
    %212 = vmatprep.subr.mxu0 0.0
    %213 = vmatpush1.msra.mxu0 0.0
    %214 = vmatprep.subr.mxu0 0.0
    %215 = vmatpush1.msra.mxu0 0.0
    %216 = vmatprep.subr.mxu0 0.0
    %217 = vmatpush1.msra.mxu0 0.0
    %218 = vmatprep.subr.mxu0 %v76
    %219 = vmatpush1.msra.mxu0 %v75
    %220 = vmatprep.subr.mxu0 %v74
    %221 = vmatpush1.msra.mxu0 %v73
    %222 = vmatprep.subr.mxu0 0.0
    %223 = vmatpush2.msra.mxu0 0.0
    %224 = vmatprep.subr.mxu0 0.0
    %225 = vmatpush2.msra.mxu0 0.0
    %226 = vmatprep.subr.mxu0 0.0
    %227 = vmatpush2.msra.mxu0 0.0
    %228 = vmatprep.subr.mxu0 0.0
    %229 = vmatpush2.msra.mxu0 0.0
    %230 = vmatprep.subr.mxu0 0.0
    %231 = vmatpush2.msra.mxu0 0.0
    %232 = vmatprep.subr.mxu0 0.0
    %233 = vmatpush2.msra.mxu0 0.0
    %234 = vmatprep.subr.mxu0 0.0
    %235 = vmatpush2.msra.mxu0 0.0
    %236 = vmatprep.subr.mxu0 0.0
    %237 = vmatpush2.msra.mxu0 0.0
    %238 = vmatprep.subr.mxu0 0.0
    %239 = vmatpush2.msra.mxu0 0.0
    %240 = vmatprep.subr.mxu0 0.0
    %241 = vmatpush2.msra.mxu0 0.0
    %242 = vmatprep.subr.mxu0 0.0
    %243 = vmatpush2.msra.mxu0 0.0
    %244 = vmatprep.subr.mxu0 0.0
    %245 = vmatpush2.msra.mxu0 0.0
    %246 = vmatprep.subr.mxu0 0.0
    %247 = vmatpush2.msra.mxu0 0.0
    %248 = vmatprep.subr.mxu0 0.0
    %249 = vmatpush2.msra.mxu0 0.0
    %250 = vmatprep.subr.mxu0 0.0
    %251 = vmatpush2.msra.mxu0 0.0
    %252 = vmatprep.subr.mxu0 0.0
    %253 = vmatpush2.msra.mxu0 0.0
    %254 = vmatprep.mubr.f32.mxu0 0.0
    %255 = vmatmul.mubr.f32.gmra.mxu0 %v185
    %v256 = vpop.f32.mrf.mxu0
    %v257 = vadd.f32 0.0, %v256
    %v258 = vpop.f32.mrf.mxu0
    %v259 = vadd.f32 0.0, %v258
    %260 = vmatprep.mubr.f32.mxu0 0.0
    %261 = vmatmul.mubr.f32.gmra.mxu0 %v188
    %v262 = vpop.f32.mrf.mxu0
    %v263 = vadd.f32 0.0, %v262
    %v264 = vpop.f32.mrf.mxu0
    %v265 = vadd.f32 0.0, %v264
    %266 = vdwg.mxu0
    %v267 = vmul.f32 %v257, %v257
    %v268 = vmul.f32 %v259, %v259
    %v269 = vsub.f32 %v263, %v267
    %v270 = vsub.f32 %v265, %v268
    %v271 = vmax.f32 %v269, 0.0
    %v272 = vmax.f32 %v270, 0.0
    %v273 = vsub.f32 %v39, %v257
    %v274 = vsub.f32 %v40, %v259
    %v275 = vadd.f32 %v271, 1e-05
    %v276 = vadd.f32 %v272, 1e-05
    %v277 = vrsqrt.pop %v275
    %v278 = vrsqrt.pop %v276
    %v279 = vmul.f32 %v273, %v277
    %v280 = vmul.f32 %v274, %v278
    %282 = vset.pattern.permute.xlu0 0
    %283 = vperm.xlu0 %282, %v104
    %v284 = vpop.permute.xlu0 %283
    %v286 = vmul.f32 %v279, %v284
    %v287 = vmul.f32 %v280, %v284
    %289 = vset.pattern.permute.xlu0 0
    %290 = vperm.xlu0 %289, %v105
    %v291 = vpop.permute.xlu0 %290
    %v293 = vadd.f32 %v286, %v291
    %v294 = vadd.f32 %v287, %v291
    %v295 = vmul.f32 %v293, 0.5
    %v296 = vmul.f32 %v294, 0.5
    %v297 = vmul.f32 %v293, 0.70710677
    %v298 = vmul.f32 %v294, 0.70710677
    %v299 = verf.f32.pop %v297
    %v300 = verf.f32.pop %v298
    %v301 = vadd.f32 %v299, 1.0
    %v302 = vadd.f32 %v300, 1.0
    %v303 = vmul.f32 %v295, %v301
    %v304 = vmul.f32 %v296, %v302
    %305 = vrot.lane.b32.xlu0 %v303, 2
    %v306 = vpop.permute.xlu0 %305
    %307 = vrot.lane.b32.xlu0 %v304, 2
    %v308 = vpop.permute.xlu0 %307
    %vm309 = vcmp.lt.s32.totalorder %v78, 2
    %v310 = vsel %vm309, %v306, %v308
    %v311 = vsel %vm309, %v308, %v306
    %v312 = vadd.s32 %v102, 4294967294
    %v313 = vadd.s32 %v103, 4294967294
    %vm314 = vcmp.ge.s32.totalorder %v312, 0
    %vm315 = vcmp.ge.s32.totalorder %v313, 0
    %vm316 = vcmp.lt.s32.totalorder %v312, 16
    %vm317 = vcmp.lt.s32.totalorder %v313, 16
    %vm318 = vmand %vm314, %vm316
    %vm319 = vmand %vm315, %vm317
    %v320 = vsel %vm318, 1, 0
    %v321 = vsel %vm319, 1, 0
    %vm322 = vcmp.eq.s32.totalorder %v320, 1
    %vm323 = vcmp.eq.s32.totalorder %v321, 1
    %v324 = vsel %vm322, %v311, 0.0
    %v325 = vsel %vm323, %v310, 0.0
    %326 = vrot.lane.b32.xlu0 %v303, 1
    %v327 = vpop.permute.xlu0 %326
    %328 = vrot.lane.b32.xlu0 %v304, 1
    %v329 = vpop.permute.xlu0 %328
    %vm330 = vcmp.lt.s32.totalorder %v78, 1
    %v331 = vsel %vm330, %v327, %v329
    %v332 = vsel %vm330, %v329, %v327
    %v333 = vadd.s32 %v102, 4294967295
    %v334 = vadd.s32 %v103, 4294967295
    %vm335 = vcmp.ge.s32.totalorder %v333, 0
    %vm336 = vcmp.ge.s32.totalorder %v334, 0
    %vm337 = vcmp.lt.s32.totalorder %v333, 16
    %vm338 = vcmp.lt.s32.totalorder %v334, 16
    %vm339 = vmand %vm335, %vm337
    %vm340 = vmand %vm336, %vm338
    %v341 = vsel %vm339, 1, 0
    %v342 = vsel %vm340, 1, 0
    %vm343 = vcmp.eq.s32.totalorder %v341, 1
    %vm344 = vcmp.eq.s32.totalorder %v342, 1
    %v345 = vsel %vm343, %v332, 0.0
    %v346 = vsel %vm344, %v331, 0.0
    %347 = vrot.lane.b32.xlu0 %v303, 127
    %v348 = vpop.permute.xlu0 %347
    %349 = vrot.lane.b32.xlu0 %v304, 127
    %v350 = vpop.permute.xlu0 %349
    %vm351 = vcmp.lt.s32.totalorder %v78, 127
    %v352 = vsel %vm351, %v348, %v350
    %v353 = vsel %vm351, %v350, %v348
    %v354 = vadd.s32 %v102, 1
    %v355 = vadd.s32 %v103, 1
    %vm356 = vcmp.ge.s32.totalorder %v354, 0
    %vm357 = vcmp.ge.s32.totalorder %v355, 0
    %vm358 = vcmp.lt.s32.totalorder %v354, 16
    %vm359 = vcmp.lt.s32.totalorder %v355, 16
    %vm360 = vmand %vm356, %vm358
    %vm361 = vmand %vm357, %vm359
    %v362 = vsel %vm360, 1, 0
    %v363 = vsel %vm361, 1, 0
    %vm364 = vcmp.eq.s32.totalorder %v362, 1
    %vm365 = vcmp.eq.s32.totalorder %v363, 1
    %v366 = vsel %vm364, %v352, 0.0
    %v367 = vsel %vm365, %v353, 0.0
    %368 = vrot.lane.b32.xlu0 %v303, 126
    %v369 = vpop.permute.xlu0 %368
    %370 = vrot.lane.b32.xlu0 %v304, 126
    %v371 = vpop.permute.xlu0 %370
    %vm372 = vcmp.lt.s32.totalorder %v78, 126
    %v373 = vsel %vm372, %v369, %v371
    %v374 = vsel %vm372, %v371, %v369
    %v375 = vadd.s32 %v102, 2
    %v376 = vadd.s32 %v103, 2
    %vm377 = vcmp.ge.s32.totalorder %v375, 0
    %vm378 = vcmp.ge.s32.totalorder %v376, 0
    %vm379 = vcmp.lt.s32.totalorder %v375, 16
    %vm380 = vcmp.lt.s32.totalorder %v376, 16
    %vm381 = vmand %vm377, %vm379
    %vm382 = vmand %vm378, %vm380
    %v383 = vsel %vm381, 1, 0
    %v384 = vsel %vm382, 1, 0
    %vm385 = vcmp.eq.s32.totalorder %v383, 1
    %vm386 = vcmp.eq.s32.totalorder %v384, 1
    %v387 = vsel %vm385, %v373, 0.0
    %v388 = vsel %vm386, %v374, 0.0
    %v389 = vld [vmem:[%s5] sm:$0xff]
    %v390 = vld [vmem:[%s6] sm:$0xff]
    %392 = vset.pattern.permute.xlu0 0
    %393 = vperm.xlu0 %392, %v390
    %v394 = vpop.permute.xlu0 %393
    %vm396 = vcmask 326656
    %v398 = vsel %vm396, %v389, 0
    %400 = vmatprep.subr.mxu0 0.0
    %401 = vmatpush1.msra.mxu0 0.0
    %402 = vmatprep.subr.mxu0 0.0
    %403 = vmatpush1.msra.mxu0 0.0
    %404 = vmatprep.subr.mxu0 0.0
    %405 = vmatpush1.msra.mxu0 0.0
    %406 = vmatprep.subr.mxu0 0.0
    %407 = vmatpush1.msra.mxu0 0.0
    %408 = vmatprep.subr.mxu0 0.0
    %409 = vmatpush1.msra.mxu0 0.0
    %410 = vmatprep.subr.mxu0 0.0
    %411 = vmatpush1.msra.mxu0 0.0
    %412 = vmatprep.subr.mxu0 0.0
    %413 = vmatpush1.msra.mxu0 0.0
    %414 = vmatprep.subr.mxu0 0.0
    %415 = vmatpush1.msra.mxu0 0.0
    %416 = vmatprep.subr.mxu0 0.0
    %417 = vmatpush1.msra.mxu0 0.0
    %418 = vmatprep.subr.mxu0 0.0
    %419 = vmatpush1.msra.mxu0 0.0
    %420 = vmatprep.subr.mxu0 0.0
    %421 = vmatpush1.msra.mxu0 0.0
    %422 = vmatprep.subr.mxu0 %v388
    %423 = vmatpush1.msra.mxu0 %v387
    %424 = vmatprep.subr.mxu0 %v367
    %425 = vmatpush1.msra.mxu0 %v366
    %426 = vmatprep.subr.mxu0 %v304
    %427 = vmatpush1.msra.mxu0 %v303
    %428 = vmatprep.subr.mxu0 %v346
    %429 = vmatpush1.msra.mxu0 %v345
    %430 = vmatprep.subr.mxu0 %v325
    %431 = vmatpush1.msra.mxu0 %v324
    %432 = vmatprep.subr.mxu0 0.0
    %433 = vmatpush2.msra.mxu0 0.0
    %434 = vmatprep.subr.mxu0 0.0
    %435 = vmatpush2.msra.mxu0 0.0
    %436 = vmatprep.subr.mxu0 0.0
    %437 = vmatpush2.msra.mxu0 0.0
    %438 = vmatprep.subr.mxu0 0.0
    %439 = vmatpush2.msra.mxu0 0.0
    %440 = vmatprep.subr.mxu0 0.0
    %441 = vmatpush2.msra.mxu0 0.0
    %442 = vmatprep.subr.mxu0 0.0
    %443 = vmatpush2.msra.mxu0 0.0
    %444 = vmatprep.subr.mxu0 0.0
    %445 = vmatpush2.msra.mxu0 0.0
    %446 = vmatprep.subr.mxu0 0.0
    %447 = vmatpush2.msra.mxu0 0.0
    %448 = vmatprep.subr.mxu0 0.0
    %449 = vmatpush2.msra.mxu0 0.0
    %450 = vmatprep.subr.mxu0 0.0
    %451 = vmatpush2.msra.mxu0 0.0
    %452 = vmatprep.subr.mxu0 0.0
    %453 = vmatpush2.msra.mxu0 0.0
    %454 = vmatprep.subr.mxu0 0.0
    %455 = vmatpush2.msra.mxu0 0.0
    %456 = vmatprep.subr.mxu0 0.0
    %457 = vmatpush2.msra.mxu0 0.0
    %458 = vmatprep.subr.mxu0 0.0
    %459 = vmatpush2.msra.mxu0 0.0
    %460 = vmatprep.subr.mxu0 0.0
    %461 = vmatpush2.msra.mxu0 0.0
    %462 = vmatprep.subr.mxu0 0.0
    %463 = vmatpush2.msra.mxu0 0.0
    %464 = vmatprep.mubr.f32.mxu0 0.0
    %465 = vmatmul.mubr.f32.gmra.mxu0 %v398
    %v466 = vpop.f32.mrf.mxu0
    %v467 = vadd.f32 %v394, %v466
    %v468 = vpop.f32.mrf.mxu0
    %v469 = vadd.f32 %v394, %v468
    %470 = vdwg.mxu0
    %v471 = vld [vmem:[%s7] sm:$0xff]
    %v472 = vld [vmem:[%s8] sm:$0xff]
    %v473 = vmul.f32 %v467, %v467
    %v474 = vmul.f32 %v469, %v469
    %475 = vmatprep.subr.mxu0 0.0
    %476 = vmatpush1.msra.mxu0 %v56
    %477 = vmatprep.subr.mxu0 0.0
    %478 = vmatpush1.msra.mxu0 %v55
    %479 = vmatprep.subr.mxu0 0.0
    %480 = vmatpush1.msra.mxu0 %v54
    %481 = vmatprep.subr.mxu0 0.0
    %482 = vmatpush1.msra.mxu0 %v53
    %483 = vmatprep.subr.mxu0 0.0
    %484 = vmatpush1.msra.mxu0 %v52
    %485 = vmatprep.subr.mxu0 0.0
    %486 = vmatpush1.msra.mxu0 %v51
    %487 = vmatprep.subr.mxu0 0.0
    %488 = vmatpush1.msra.mxu0 %v50
    %489 = vmatprep.subr.mxu0 0.0
    %490 = vmatpush1.msra.mxu0 %v49
    %491 = vmatprep.subr.mxu0 0.0
    %492 = vmatpush1.msra.mxu0 %v48
    %493 = vmatprep.subr.mxu0 0.0
    %494 = vmatpush1.msra.mxu0 %v47
    %495 = vmatprep.subr.mxu0 0.0
    %496 = vmatpush1.msra.mxu0 %v46
    %497 = vmatprep.subr.mxu0 0.0
    %498 = vmatpush1.msra.mxu0 %v45
    %499 = vmatprep.subr.mxu0 0.0
    %500 = vmatpush1.msra.mxu0 %v44
    %501 = vmatprep.subr.mxu0 0.0
    %502 = vmatpush1.msra.mxu0 %v43
    %503 = vmatprep.subr.mxu0 0.0
    %504 = vmatpush1.msra.mxu0 %v42
    %505 = vmatprep.subr.mxu0 0.0
    %506 = vmatpush1.msra.mxu0 %v41
    %507 = vmatprep.subr.mxu0 0.0
    %508 = vmatpush2.msra.mxu0 %v72
    %509 = vmatprep.subr.mxu0 0.0
    %510 = vmatpush2.msra.mxu0 %v71
    %511 = vmatprep.subr.mxu0 0.0
    %512 = vmatpush2.msra.mxu0 %v70
    %513 = vmatprep.subr.mxu0 0.0
    %514 = vmatpush2.msra.mxu0 %v69
    %515 = vmatprep.subr.mxu0 0.0
    %516 = vmatpush2.msra.mxu0 %v68
    %517 = vmatprep.subr.mxu0 0.0
    %518 = vmatpush2.msra.mxu0 %v67
    %519 = vmatprep.subr.mxu0 0.0
    %520 = vmatpush2.msra.mxu0 %v66
    %521 = vmatprep.subr.mxu0 0.0
    %522 = vmatpush2.msra.mxu0 %v65
    %523 = vmatprep.subr.mxu0 0.0
    %524 = vmatpush2.msra.mxu0 %v64
    %525 = vmatprep.subr.mxu0 0.0
    %526 = vmatpush2.msra.mxu0 %v63
    %527 = vmatprep.subr.mxu0 0.0
    %528 = vmatpush2.msra.mxu0 %v62
    %529 = vmatprep.subr.mxu0 0.0
    %530 = vmatpush2.msra.mxu0 %v61
    %531 = vmatprep.subr.mxu0 0.0
    %532 = vmatpush2.msra.mxu0 %v60
    %533 = vmatprep.subr.mxu0 0.0
    %534 = vmatpush2.msra.mxu0 %v59
    %535 = vmatprep.subr.mxu0 0.0
    %536 = vmatpush2.msra.mxu0 %v58
    %537 = vmatprep.subr.mxu0 0.0
    %538 = vmatpush2.msra.mxu0 %v57
    %539 = vmatprep.mubr.f32.mxu0 %v469
    %540 = vmatmul.mubr.f32.gmra.mxu0 %v467
    %v541 = vpop.f32.mrf.mxu0
    %v542 = vadd.f32 0.0, %v541
    %v543 = vpop.f32.mrf.mxu0
    %544 = vmatprep.mubr.f32.mxu0 %v474
    %545 = vmatmul.mubr.f32.gmra.mxu0 %v473
    %v546 = vpop.f32.mrf.mxu0
    %v547 = vadd.f32 0.0, %v546
    %v548 = vpop.f32.mrf.mxu0
    %549 = vdwg.mxu0
    %v551 = vsel %vm183, %v542, 0
    %v554 = vsel %vm183, %v547, 0
    %556 = vmatprep.subr.mxu0 0.0
    %557 = vmatpush1.msra.mxu0 0.0
    %558 = vmatprep.subr.mxu0 0.0
    %559 = vmatpush1.msra.mxu0 0.0
    %560 = vmatprep.subr.mxu0 0.0
    %561 = vmatpush1.msra.mxu0 0.0
    %562 = vmatprep.subr.mxu0 0.0
    %563 = vmatpush1.msra.mxu0 0.0
    %564 = vmatprep.subr.mxu0 0.0
    %565 = vmatpush1.msra.mxu0 0.0
    %566 = vmatprep.subr.mxu0 0.0
    %567 = vmatpush1.msra.mxu0 0.0
    %568 = vmatprep.subr.mxu0 0.0
    %569 = vmatpush1.msra.mxu0 0.0
    %570 = vmatprep.subr.mxu0 0.0
    %571 = vmatpush1.msra.mxu0 0.0
    %572 = vmatprep.subr.mxu0 0.0
    %573 = vmatpush1.msra.mxu0 0.0
    %574 = vmatprep.subr.mxu0 0.0
    %575 = vmatpush1.msra.mxu0 0.0
    %576 = vmatprep.subr.mxu0 0.0
    %577 = vmatpush1.msra.mxu0 0.0
    %578 = vmatprep.subr.mxu0 0.0
    %579 = vmatpush1.msra.mxu0 0.0
    %580 = vmatprep.subr.mxu0 0.0
    %581 = vmatpush1.msra.mxu0 0.0
    %582 = vmatprep.subr.mxu0 0.0
    %583 = vmatpush1.msra.mxu0 0.0
    %584 = vmatprep.subr.mxu0 %v76
    %585 = vmatpush1.msra.mxu0 %v75
    %586 = vmatprep.subr.mxu0 %v74
    %587 = vmatpush1.msra.mxu0 %v73
    %588 = vmatprep.subr.mxu0 0.0
    %589 = vmatpush2.msra.mxu0 0.0
    %590 = vmatprep.subr.mxu0 0.0
    %591 = vmatpush2.msra.mxu0 0.0
    %592 = vmatprep.subr.mxu0 0.0
    %593 = vmatpush2.msra.mxu0 0.0
    %594 = vmatprep.subr.mxu0 0.0
    %595 = vmatpush2.msra.mxu0 0.0
    %596 = vmatprep.subr.mxu0 0.0
    %597 = vmatpush2.msra.mxu0 0.0
    %598 = vmatprep.subr.mxu0 0.0
    %599 = vmatpush2.msra.mxu0 0.0
    %600 = vmatprep.subr.mxu0 0.0
    %601 = vmatpush2.msra.mxu0 0.0
    %602 = vmatprep.subr.mxu0 0.0
    %603 = vmatpush2.msra.mxu0 0.0
    %604 = vmatprep.subr.mxu0 0.0
    %605 = vmatpush2.msra.mxu0 0.0
    %606 = vmatprep.subr.mxu0 0.0
    %607 = vmatpush2.msra.mxu0 0.0
    %608 = vmatprep.subr.mxu0 0.0
    %609 = vmatpush2.msra.mxu0 0.0
    %610 = vmatprep.subr.mxu0 0.0
    %611 = vmatpush2.msra.mxu0 0.0
    %612 = vmatprep.subr.mxu0 0.0
    %613 = vmatpush2.msra.mxu0 0.0
    %614 = vmatprep.subr.mxu0 0.0
    %615 = vmatpush2.msra.mxu0 0.0
    %616 = vmatprep.subr.mxu0 0.0
    %617 = vmatpush2.msra.mxu0 0.0
    %618 = vmatprep.subr.mxu0 0.0
    %619 = vmatpush2.msra.mxu0 0.0
    %620 = vmatprep.mubr.f32.mxu0 0.0
    %621 = vmatmul.mubr.f32.gmra.mxu0 %v551
    %v622 = vpop.f32.mrf.mxu0
    %v623 = vadd.f32 0.0, %v622
    %v624 = vpop.f32.mrf.mxu0
    %v625 = vadd.f32 0.0, %v624
    %626 = vmatprep.mubr.f32.mxu0 0.0
    %627 = vmatmul.mubr.f32.gmra.mxu0 %v554
    %v628 = vpop.f32.mrf.mxu0
    %v629 = vadd.f32 0.0, %v628
    %v630 = vpop.f32.mrf.mxu0
    %v631 = vadd.f32 0.0, %v630
    %632 = vdwg.mxu0
    %v633 = vmul.f32 %v623, %v623
    %v634 = vmul.f32 %v625, %v625
    %v635 = vsub.f32 %v629, %v633
    %v636 = vsub.f32 %v631, %v634
    %v637 = vmax.f32 %v635, 0.0
    %v638 = vmax.f32 %v636, 0.0
    %v639 = vsub.f32 %v467, %v623
    %v640 = vsub.f32 %v469, %v625
    %v641 = vadd.f32 %v637, 1e-05
    %v642 = vadd.f32 %v638, 1e-05
    %v643 = vrsqrt.pop %v641
    %v644 = vrsqrt.pop %v642
    %v645 = vmul.f32 %v639, %v643
    %v646 = vmul.f32 %v640, %v644
    %648 = vset.pattern.permute.xlu0 0
    %649 = vperm.xlu0 %648, %v471
    %v650 = vpop.permute.xlu0 %649
    %v652 = vmul.f32 %v645, %v650
    %v653 = vmul.f32 %v646, %v650
    %655 = vset.pattern.permute.xlu0 0
    %656 = vperm.xlu0 %655, %v472
    %v657 = vpop.permute.xlu0 %656
    %v659 = vadd.f32 %v652, %v657
    %v660 = vadd.f32 %v653, %v657
    %v661 = vmul.f32 %v659, 0.5
    %v662 = vmul.f32 %v660, 0.5
    %v663 = vmul.f32 %v659, 0.70710677
    %v664 = vmul.f32 %v660, 0.70710677
    %v665 = verf.f32.pop %v663
    %v666 = verf.f32.pop %v664
    %v667 = vadd.f32 %v665, 1.0
    %v668 = vadd.f32 %v666, 1.0
    %v669 = vmul.f32 %v661, %v667
    %v670 = vmul.f32 %v662, %v668
    %v671 = vld [vmem:[%s9] sm:$0xff]
    %v672 = vld [vmem:[%s10] sm:$0xff]
    %674 = vset.pattern.permute.xlu0 0
    %675 = vperm.xlu0 %674, %v672
    %v676 = vpop.permute.xlu0 %675
    %vm678 = vcmask 64512
    %v680 = vsel %vm678, %v671, 0
    %682 = vmatprep.subr.mxu0 0.0
    %683 = vmatpush1.msra.mxu0 0.0
    %684 = vmatprep.subr.mxu0 0.0
    %685 = vmatpush1.msra.mxu0 0.0
    %686 = vmatprep.subr.mxu0 0.0
    %687 = vmatpush1.msra.mxu0 0.0
    %688 = vmatprep.subr.mxu0 0.0
    %689 = vmatpush1.msra.mxu0 0.0
    %690 = vmatprep.subr.mxu0 0.0
    %691 = vmatpush1.msra.mxu0 0.0
    %692 = vmatprep.subr.mxu0 0.0
    %693 = vmatpush1.msra.mxu0 0.0
    %694 = vmatprep.subr.mxu0 0.0
    %695 = vmatpush1.msra.mxu0 0.0
    %696 = vmatprep.subr.mxu0 0.0
    %697 = vmatpush1.msra.mxu0 0.0
    %698 = vmatprep.subr.mxu0 0.0
    %699 = vmatpush1.msra.mxu0 0.0
    %700 = vmatprep.subr.mxu0 0.0
    %701 = vmatpush1.msra.mxu0 0.0
    %702 = vmatprep.subr.mxu0 0.0
    %703 = vmatpush1.msra.mxu0 0.0
    %704 = vmatprep.subr.mxu0 0.0
    %705 = vmatpush1.msra.mxu0 0.0
    %706 = vmatprep.subr.mxu0 0.0
    %707 = vmatpush1.msra.mxu0 0.0
    %708 = vmatprep.subr.mxu0 0.0
    %709 = vmatpush1.msra.mxu0 0.0
    %710 = vmatprep.subr.mxu0 0.0
    %711 = vmatpush1.msra.mxu0 0.0
    %712 = vmatprep.subr.mxu0 %v670
    %713 = vmatpush1.msra.mxu0 %v669
    %714 = vmatprep.subr.mxu0 0.0
    %715 = vmatpush2.msra.mxu0 0.0
    %716 = vmatprep.subr.mxu0 0.0
    %717 = vmatpush2.msra.mxu0 0.0
    %718 = vmatprep.subr.mxu0 0.0
    %719 = vmatpush2.msra.mxu0 0.0
    %720 = vmatprep.subr.mxu0 0.0
    %721 = vmatpush2.msra.mxu0 0.0
    %722 = vmatprep.subr.mxu0 0.0
    %723 = vmatpush2.msra.mxu0 0.0
    %724 = vmatprep.subr.mxu0 0.0
    %725 = vmatpush2.msra.mxu0 0.0
    %726 = vmatprep.subr.mxu0 0.0
    %727 = vmatpush2.msra.mxu0 0.0
    %728 = vmatprep.subr.mxu0 0.0
    %729 = vmatpush2.msra.mxu0 0.0
    %730 = vmatprep.subr.mxu0 0.0
    %731 = vmatpush2.msra.mxu0 0.0
    %732 = vmatprep.subr.mxu0 0.0
    %733 = vmatpush2.msra.mxu0 0.0
    %734 = vmatprep.subr.mxu0 0.0
    %735 = vmatpush2.msra.mxu0 0.0
    %736 = vmatprep.subr.mxu0 0.0
    %737 = vmatpush2.msra.mxu0 0.0
    %738 = vmatprep.subr.mxu0 0.0
    %739 = vmatpush2.msra.mxu0 0.0
    %740 = vmatprep.subr.mxu0 0.0
    %741 = vmatpush2.msra.mxu0 0.0
    %742 = vmatprep.subr.mxu0 0.0
    %743 = vmatpush2.msra.mxu0 0.0
    %744 = vmatprep.subr.mxu0 0.0
    %745 = vmatpush2.msra.mxu0 0.0
    %746 = vmatprep.mubr.f32.mxu0 0.0
    %747 = vmatmul.mubr.f32.gmra.mxu0 %v680
    %v748 = vpop.f32.mrf.mxu0
    %v749 = vadd.f32 %v676, %v748
    %v750 = vpop.f32.mrf.mxu0
    %v751 = vadd.f32 %v676, %v750
    %752 = vdwg.mxu0
    %v753 = vadd.f32 %v749, %v467
    %v754 = vadd.f32 %v751, %v469
    %755 = vst [vmem:[#allocation2] sm:$0xff] %v753
    %756 = vst [vmem:[#allocation2 + $0x8] sm:$0xff] %v754
    // Predicated region
    $region46: #{tpu_custom_call.1} parent=1 // pred_check
      _
    $region47: #{tpu_custom_call.1} parent=1 // pred_check_branch
      %758 = sbr.rel (0) target = $region49
    $region48: #{tpu_custom_call.1} parent=1 // pred_region
      %s760 = ssub.s32 256, 256
      %761 = vsyncadd [#allocation3], %s760
      %s763 = sshll.u32 [#allocation2], 4
      %s764 = int_to_ptr.vmem [resolvable:$true] %s763
      %766 = dma.vmem_to_hbm [thread:$0]  %s764, 256, %s11, [#allocation3]
    $region49: #{tpu_custom_call.1} parent=1 // pred_fallthru
      _
    // Predicated region
    $region50: #{tpu_custom_call.1} parent=1 // pred_check
      _
    $region51: #{tpu_custom_call.1} parent=1 // pred_check_branch
      %768 = sbr.rel (0) target = $region53
    $region52: #{tpu_custom_call.1} parent=1 // pred_region
      %769 = dma.done [#allocation3], 256
    $region53: #{tpu_custom_call.1} parent=1 // pred_fallthru
      _
    %770 = vsyncpa [#allocation3], 1

</llo_original>
